<compile_context>
chip_gen: v6e
topology: v6e:2x2x1
jax: 0.10.0
libtpu: 0.0.40
codegen_flags: <defaults>
</compile_context>

<pallas_src>
import functools

import numpy as np
import jax
import jax.numpy as jnp
from jax.experimental import pallas as pl
from jax.experimental.pallas import tpu as pltpu

FP = 128   # padded in_feats     (lane dim)
HP = 128   # padded hidden dim   (lane dim)
CP = 128   # padded num_classes  (lane dim)


def _round_up(n, m):
    return ((n + m - 1) // m) * m


# ----------------------------- Pallas kernel ------------------------------ #
def graphsage_kernel(a_ref, x_ref, w_ref, b_ref, o_ref, *, n_valid):
    a = a_ref[...]                        # (NP, NP)    bf16 row-normalized adjacency
    x = x_ref[...]                        # (NP, FP)    bf16 node features
    w1 = w_ref[0]                         # (2*FP, HP)  bf16  = [W_self1; W_neigh1]
    w2 = w_ref[1]                         # (2*HP, CP)  bf16  = [W_self2; W_neigh2]
    b = b_ref[...]                        # (8, 128)    f32; rows 0/1 = b1/b2
    b1 = b[0:1, :]
    b2 = b[1:2, :]

    np_rows = a.shape[0]
    row_valid = jax.lax.broadcasted_iota(jnp.int32, (np_rows, 1), 0) < n_valid

    # ---- layer 1: SAGEConv(in_feats -> h_feats, 'mean') ----
    neigh1 = jnp.dot(a, x, preferred_element_type=jnp.float32)          # mean-agg
    cat1 = jnp.concatenate([x, neigh1.astype(jnp.bfloat16)], axis=-1)   # (NP, 2*FP)
    h1 = jnp.dot(cat1, w1, preferred_element_type=jnp.float32) + b1
    h1 = jnp.maximum(h1, 0.0)                                           # F.relu
    h1 = jnp.where(row_valid, h1, 0.0)    # keep padded rows exactly zero
    h1b = h1.astype(jnp.bfloat16)

    # ---- layer 2: SAGEConv(h_feats -> num_classes, 'mean') ----
    neigh2 = jnp.dot(a, h1b, preferred_element_type=jnp.float32)
    cat2 = jnp.concatenate([h1b, neigh2.astype(jnp.bfloat16)], axis=-1)  # (NP, 2*HP)
    o_ref[...] = jnp.dot(cat2, w2, preferred_element_type=jnp.float32) + b2


# --------------------------- parameter packing ----------------------------- #
def prepare_params(params):
    """Pad, fuse ([W_self; W_neigh]) and cast the weights ONCE at init time."""
    def pad2(m, r, c):
        mr, mc = m.shape
        return jnp.pad(m, ((0, r - mr), (0, c - mc)))

    w1 = jnp.concatenate([pad2(params["w_self1"], FP, HP),
                          pad2(params["w_neigh1"], FP, HP)], axis=0)    # (2FP, HP)
    w2 = jnp.concatenate([pad2(params["w_self2"], HP, CP),
                          pad2(params["w_neigh2"], HP, CP)], axis=0)    # (2HP, CP)
    w_slab = jnp.stack([w1, w2]).astype(jnp.bfloat16)                   # (2, 256, 128)

    b_slab = jnp.zeros((8, 128), jnp.float32)
    b_slab = b_slab.at[0, :params["b1"].shape[0]].set(params["b1"])
    b_slab = b_slab.at[1, :params["b2"].shape[0]].set(params["b2"])
    return w_slab, b_slab


# ------------------------------ jitted forward ----------------------------- #
@functools.partial(jax.jit, static_argnames=("n_nodes", "num_classes"))
def graphsage_forward(a_norm, x, w_slab, b_slab, *, n_nodes, num_classes):
    # Node dim only needs sublane (8) alignment; use 16 so bf16 packing is clean.
    np_rows = _round_up(n_nodes, 16)

    a_p = jnp.pad(a_norm, ((0, np_rows - n_nodes),
                           (0, np_rows - n_nodes))).astype(jnp.bfloat16)
    x_p = jnp.pad(x, ((0, np_rows - n_nodes),
                      (0, FP - x.shape[1]))).astype(jnp.bfloat16)

    vmem = pl.BlockSpec(memory_space=pltpu.MemorySpace.VMEM)
    out_p = pl.pallas_call(
        functools.partial(graphsage_kernel, n_valid=n_nodes),
        out_shape=jax.ShapeDtypeStruct((np_rows, CP), jnp.float32),
        in_specs=[vmem] * 4,
        out_specs=vmem,
    )(a_p, x_p, w_slab, b_slab)

    return out_p[:n_nodes, :num_classes]


# --------------------------------- driver ---------------------------------- #
if __name__ == "__main__":
    N = 34          # Zachary karate-club sized graph (synthetic edges)
    IN_FEATS = 8
    H_FEATS = 16
    NUM_CLASSES = 2

    key = jax.random.PRNGKey(0)
    k_adj, k_x, k1, k2, k3, k4 = jax.random.split(key, 6)

    # synthetic undirected graph (deterministic), dense adjacency, no self-loops
    upper = jax.random.bernoulli(k_adj, p=0.15, shape=(N, N)).astype(jnp.float32)
    upper = jnp.triu(upper, k=1)
    adj = upper + upper.T
    deg = jnp.sum(adj, axis=1, keepdims=True)
    a_norm = adj / jnp.maximum(deg, 1.0)          # mean-aggregation matrix

    x = jax.random.normal(k_x, (N, IN_FEATS), dtype=jnp.float32)

    def glorot(k, shape):
        lim = np.sqrt(6.0 / (shape[0] + shape[1]))
        return jax.random.uniform(k, shape, jnp.float32, -lim, lim)

    params = dict(
        w_self1=glorot(k1, (IN_FEATS, H_FEATS)),
        w_neigh1=glorot(k2, (IN_FEATS, H_FEATS)),
        b1=jnp.zeros((H_FEATS,), jnp.float32),
        w_self2=glorot(k3, (H_FEATS, NUM_CLASSES)),
        w_neigh2=glorot(k4, (H_FEATS, NUM_CLASSES)),
        b2=jnp.zeros((NUM_CLASSES,), jnp.float32),
    )

    # one-time padding/fusion/cast of weights (hoisted out of the forward pass)
    w_slab, b_slab = prepare_params(params)

    out = graphsage_forward(a_norm, x, w_slab, b_slab,
                            n_nodes=N, num_classes=NUM_CLASSES)
    out = jax.block_until_ready(out)

    # pure-JAX f32 reference for the same math
    h1_ref = jnp.maximum(
        x @ params["w_self1"] + (a_norm @ x) @ params["w_neigh1"] + params["b1"], 0.0)
    out_ref = (h1_ref @ params["w_self2"]
               + (a_norm @ h1_ref) @ params["w_neigh2"] + params["b2"])

    assert out.shape == (N, NUM_CLASSES)
    # bf16 matmul inputs (f32 accumulate) -> relaxed tolerance vs f32 reference
    assert np.allclose(np.asarray(out), np.asarray(out_ref), atol=5e-2, rtol=5e-2)

    print("KERNEL_OK")
</pallas_src>

<mosaic_0001>
module attributes {stable_mosaic.version = 11 : i64} {
  func.func @graphsage_kernel(%arg0: memref<48x48xbf16, #tpu.memory_space<vmem>>, %arg1: memref<48x128xbf16, #tpu.memory_space<vmem>>, %arg2: memref<2x256x128xbf16, #tpu.memory_space<vmem>>, %arg3: memref<8x128xf32, #tpu.memory_space<vmem>>, %arg4: memref<48x128xf32, #tpu.memory_space<vmem>>) attributes {dimension_semantics = [], scalar_prefetch = 0 : i64, scratch_operands = 0 : i64, tpu.core_type = #tpu.core_type<tc>} {
    %c0 = arith.constant 0 : index
    %c0_0 = arith.constant 0 : index
    %0 = vector.load %arg0[%c0, %c0_0] : memref<48x48xbf16, #tpu.memory_space<vmem>>, vector<48x48xbf16>
    %c0_1 = arith.constant 0 : index
    %c0_2 = arith.constant 0 : index
    %1 = vector.load %arg1[%c0_1, %c0_2] : memref<48x128xbf16, #tpu.memory_space<vmem>>, vector<48x128xbf16>
    %c0_3 = arith.constant 0 : index
    %c0_4 = arith.constant 0 : index
    %c0_5 = arith.constant 0 : index
    %2 = vector.load %arg2[%c0_3, %c0_4, %c0_5] : memref<2x256x128xbf16, #tpu.memory_space<vmem>>, vector<1x256x128xbf16>
    %3 = vector.shape_cast %2 : vector<1x256x128xbf16> to vector<256x128xbf16>
    %c1 = arith.constant 1 : index
    %c0_6 = arith.constant 0 : index
    %c0_7 = arith.constant 0 : index
    %4 = vector.load %arg2[%c1, %c0_6, %c0_7] : memref<2x256x128xbf16, #tpu.memory_space<vmem>>, vector<1x256x128xbf16>
    %5 = vector.shape_cast %4 : vector<1x256x128xbf16> to vector<256x128xbf16>
    %c0_8 = arith.constant 0 : index
    %c0_9 = arith.constant 0 : index
    %6 = vector.load %arg3[%c0_8, %c0_9] : memref<8x128xf32, #tpu.memory_space<vmem>>, vector<8x128xf32>
    %7 = vector.extract_strided_slice %6 {offsets = [0, 0], sizes = [1, 128], strides = [1, 1]} : vector<8x128xf32> to vector<1x128xf32>
    %8 = vector.extract_strided_slice %6 {offsets = [1, 0], sizes = [1, 128], strides = [1, 1]} : vector<8x128xf32> to vector<1x128xf32>
    %9 = tpu.iota {dimensions = array<i32: 0>} : vector<48x1xi32>
    %c34_i32 = arith.constant 34 : i32
    %10 = vector.broadcast %c34_i32 : i32 to vector<48x1xi32>
    %11 = arith.cmpi slt, %9, %10 : vector<48x1xi32>
    %cst = arith.constant dense<0.000000e+00> : vector<48x128xf32>
    %12 = tpu.matmul %0, %1, %cst {dimension_numbers = #tpu.dot_dimension_numbers<[1], [0], [0], [1], [0, 0, 1, 1], [], []>} : vector<48x48xbf16>, vector<48x128xbf16>, vector<48x128xf32> -> vector<48x128xf32>
    %13 = arith.truncf %12 : vector<48x128xf32> to vector<48x128xbf16>
    %14 = tpu.concatenate %1, %13 in 1 : vector<48x128xbf16>, vector<48x128xbf16> -> vector<48x256xbf16>
    %cst_10 = arith.constant dense<0.000000e+00> : vector<48x128xf32>
    %15 = tpu.matmul %14, %3, %cst_10 {dimension_numbers = #tpu.dot_dimension_numbers<[1], [0], [0], [1], [0, 0, 1, 1], [], []>} : vector<48x256xbf16>, vector<256x128xbf16>, vector<48x128xf32> -> vector<48x128xf32>
    %16 = vector.broadcast %7 : vector<1x128xf32> to vector<48x128xf32>
    %17 = arith.addf %15, %16 : vector<48x128xf32>
    %cst_11 = arith.constant 0.000000e+00 : f32
    %18 = vector.broadcast %cst_11 : f32 to vector<48x128xf32>
    %19 = arith.maximumf %17, %18 : vector<48x128xf32>
    %cst_12 = arith.constant 0.000000e+00 : f32
    %20 = vector.shape_cast %11 : vector<48x1xi1> to vector<48x1xi1>
    %21 = vector.broadcast %20 : vector<48x1xi1> to vector<48x128xi1>
    %22 = vector.broadcast %cst_12 : f32 to vector<48x128xf32>
    %23 = arith.select %21, %19, %22 : vector<48x128xi1>, vector<48x128xf32>
    %24 = arith.truncf %23 : vector<48x128xf32> to vector<48x128xbf16>
    %cst_13 = arith.constant dense<0.000000e+00> : vector<48x128xf32>
    %25 = tpu.matmul %0, %24, %cst_13 {dimension_numbers = #tpu.dot_dimension_numbers<[1], [0], [0], [1], [0, 0, 1, 1], [], []>} : vector<48x48xbf16>, vector<48x128xbf16>, vector<48x128xf32> -> vector<48x128xf32>
    %26 = arith.truncf %25 : vector<48x128xf32> to vector<48x128xbf16>
    %27 = tpu.concatenate %24, %26 in 1 : vector<48x128xbf16>, vector<48x128xbf16> -> vector<48x256xbf16>
    %cst_14 = arith.constant dense<0.000000e+00> : vector<48x128xf32>
    %28 = tpu.matmul %27, %5, %cst_14 {dimension_numbers = #tpu.dot_dimension_numbers<[1], [0], [0], [1], [0, 0, 1, 1], [], []>} : vector<48x256xbf16>, vector<256x128xbf16>, vector<48x128xf32> -> vector<48x128xf32>
    %29 = vector.broadcast %8 : vector<1x128xf32> to vector<48x128xf32>
    %30 = arith.addf %28, %29 : vector<48x128xf32>
    %c0_15 = arith.constant 0 : index
    %c0_16 = arith.constant 0 : index
    %31 = vector.load %arg4[%c0_15, %c0_16] : memref<48x128xf32, #tpu.memory_space<vmem>>, vector<48x128xf32>
    tpu.vector_store %arg4[%c0_15, %c0_16], %30 {strides = array<i32>} : memref<48x128xf32, #tpu.memory_space<vmem>>, vector<48x128xf32>,
    return
  }
}

</mosaic_0001>

<llo_original>
// kernel: graphsage_forward.1
$region0: #{graphsage_forward.1}
  #allocation0 [shape = 'u32[]', space=smem, size = 0x4, offset = 0x4, fixed_abs, tag = 'smem constant byte address 0x4 - core index']
  #allocation1 [shape = 'u32[144,128]{1,0:T(1,128)}', space=vmem, size = 0x12000, scoped, tag = 'internal scratch']
  %s0 = inlined_call_operand.vmem [shape: bf16[48,48], index: 0, kind: input, shape index: {}]
  %s1 = inlined_call_operand.vmem [shape: bf16[48,128], index: 1, kind: input, shape index: {}]
  %s2 = inlined_call_operand.hbm [shape: bf16[2,256,128], index: 2, kind: input, shape index: {}]
  %s3 = inlined_call_operand.vmem [shape: f32[8,128], index: 3, kind: input, shape index: {}]
  %s4 = inlined_call_operand.vmem [shape: f32[48,128], index: 4, kind: output, shape index: {}]
  %s5 = sld [smem:[#allocation0]]
  $region30: #{graphsage_forward.1} parent=0
    _
  %s7 = ssub.s32 1, %s5
  %s8 = scalar_select 0, %s7, %s5
  $region1: #{graphsage_forward.1} parent=0
    #allocation2 [shape = 'u8[131072]{0}', space=vmem, size = 0x20000, scoped, tag = 'input window, operand 2, single buffered']
    #allocation3 [shape = 's32[1]{0}', space=sflag, size = 0x4, scoped, tag = 'scoped memory for graphsage_forward.1']
    %9 = vsyncpa [#allocation3], 0
    // Predicated region
    $region2: #{graphsage_forward.1} parent=1 // pred_check
      _
    $region3: #{graphsage_forward.1} parent=1 // pred_check_branch
      %11 = sbr.rel (0) target = $region5
    $region4: #{graphsage_forward.1} parent=1 // pred_region
      _
    $region5: #{graphsage_forward.1} parent=1 // pred_fallthru
      _
    // Predicated region
    $region6: #{graphsage_forward.1} parent=1 // pred_check
      _
    $region7: #{graphsage_forward.1} parent=1 // pred_check_branch
      %13 = sbr.rel (0) target = $region9
    $region8: #{graphsage_forward.1} parent=1 // pred_region
      _
    $region9: #{graphsage_forward.1} parent=1 // pred_fallthru
      _
    // Predicated region
    $region10: #{graphsage_forward.1} parent=1 // pred_check
      _
    $region11: #{graphsage_forward.1} parent=1 // pred_check_branch
      %15 = sbr.rel (0) target = $region13
    $region12: #{graphsage_forward.1} parent=1 // pred_region
      %s17 = ssub.s32 4096, 4096
      %18 = vsyncadd [#allocation3], %s17
      %s19 = sshll.u32 [#allocation2], 4
      %s20 = int_to_ptr.vmem [resolvable:$true] %s19
      %25 = dma.hbm_to_vmem [thread:$0]  %s2, 4096, %s20, [#allocation3], 64, 64, 4
    $region13: #{graphsage_forward.1} parent=1 // pred_fallthru
      _
    // Predicated region
    $region14: #{graphsage_forward.1} parent=1 // pred_check
      _
    $region15: #{graphsage_forward.1} parent=1 // pred_check_branch
      %27 = sbr.rel (0) target = $region17
    $region16: #{graphsage_forward.1} parent=1 // pred_region
      _
    $region17: #{graphsage_forward.1} parent=1 // pred_fallthru
      _
    // Predicated region
    $region18: #{graphsage_forward.1} parent=1 // pred_check
      _
    $region19: #{graphsage_forward.1} parent=1 // pred_check_branch
      %29 = sbr.rel (0) target = $region21
    $region20: #{graphsage_forward.1} parent=1 // pred_region
      %30 = dma.done [#allocation3], 4096
    $region21: #{graphsage_forward.1} parent=1 // pred_fallthru
      _
    %v32 = vld [vmem:[%s0] sm:$0xf]
    %v33 = vld [vmem:[%s0 + $0x4] sm:$0xf]
    %v34 = vld [vmem:[%s0 + $0x8] sm:$0xf]
    %v35 = vld [vmem:[%s0 + $0xc] sm:$0xf]
    %v36 = vld [vmem:[%s0 + $0x10] sm:$0xf]
    %v37 = vld [vmem:[%s0 + $0x14] sm:$0xf]
    %v38 = vld [vmem:[%s1] sm:$0xf]
    %v39 = vld [vmem:[%s1 + $0x4] sm:$0xf]
    %v40 = vld [vmem:[%s1 + $0x8] sm:$0xf]
    %v41 = vld [vmem:[%s1 + $0xc] sm:$0xf]
    %v42 = vld [vmem:[%s1 + $0x10] sm:$0xf]
    %v43 = vld [vmem:[%s1 + $0x14] sm:$0xf]
    %v44 = vld [vmem:[#allocation2] sm:$0xf]
    %v45 = vld [vmem:[#allocation2 + $0x4] sm:$0xf]
    %v46 = vld [vmem:[#allocation2 + $0x8] sm:$0xf]
    %v47 = vld [vmem:[#allocation2 + $0xc] sm:$0xf]
    %v48 = vld [vmem:[#allocation2 + $0x10] sm:$0xf]
    %v49 = vld [vmem:[#allocation2 + $0x14] sm:$0xf]
    %v50 = vld [vmem:[#allocation2 + $0x18] sm:$0xf]
    %v51 = vld [vmem:[#allocation2 + $0x1c] sm:$0xf]
    %v52 = vld [vmem:[#allocation2 + $0x20] sm:$0xf]
    %v53 = vld [vmem:[#allocation2 + $0x24] sm:$0xf]
    %v54 = vld [vmem:[#allocation2 + $0x28] sm:$0xf]
    %v55 = vld [vmem:[#allocation2 + $0x2c] sm:$0xf]
    %v56 = vld [vmem:[#allocation2 + $0x30] sm:$0xf]
    %v57 = vld [vmem:[#allocation2 + $0x34] sm:$0xf]
    %v58 = vld [vmem:[#allocation2 + $0x38] sm:$0xf]
    %v59 = vld [vmem:[#allocation2 + $0x3c] sm:$0xf]
    %v60 = vld [vmem:[#allocation2 + $0x40] sm:$0xf]
    %v61 = vld [vmem:[#allocation2 + $0x44] sm:$0xf]
    %v62 = vld [vmem:[#allocation2 + $0x48] sm:$0xf]
    %v63 = vld [vmem:[#allocation2 + $0x4c] sm:$0xf]
    %v64 = vld [vmem:[#allocation2 + $0x50] sm:$0xf]
    %v65 = vld [vmem:[#allocation2 + $0x54] sm:$0xf]
    %v66 = vld [vmem:[#allocation2 + $0x58] sm:$0xf]
    %v67 = vld [vmem:[#allocation2 + $0x5c] sm:$0xf]
    %v68 = vld [vmem:[#allocation2 + $0x60] sm:$0xf]
    %v69 = vld [vmem:[#allocation2 + $0x64] sm:$0xf]
    %v70 = vld [vmem:[#allocation2 + $0x68] sm:$0xf]
    %v71 = vld [vmem:[#allocation2 + $0x6c] sm:$0xf]
    %v72 = vld [vmem:[#allocation2 + $0x70] sm:$0xf]
    %v73 = vld [vmem:[#allocation2 + $0x74] sm:$0xf]
    %v74 = vld [vmem:[#allocation2 + $0x78] sm:$0xf]
    %v75 = vld [vmem:[#allocation2 + $0x7c] sm:$0xf]
    %s76 = scalar_lea.vmem [#allocation2], 128
    %v77 = vld [vmem:[%s76] sm:$0xf]
    %v78 = vld [vmem:[%s76 + $0x4] sm:$0xf]
    %v79 = vld [vmem:[%s76 + $0x8] sm:$0xf]
    %v80 = vld [vmem:[%s76 + $0xc] sm:$0xf]
    %v81 = vld [vmem:[%s76 + $0x10] sm:$0xf]
    %v82 = vld [vmem:[%s76 + $0x14] sm:$0xf]
    %v83 = vld [vmem:[%s76 + $0x18] sm:$0xf]
    %v84 = vld [vmem:[%s76 + $0x1c] sm:$0xf]
    %v85 = vld [vmem:[%s76 + $0x20] sm:$0xf]
    %v86 = vld [vmem:[%s76 + $0x24] sm:$0xf]
    %v87 = vld [vmem:[%s76 + $0x28] sm:$0xf]
    %v88 = vld [vmem:[%s76 + $0x2c] sm:$0xf]
    %v89 = vld [vmem:[%s76 + $0x30] sm:$0xf]
    %v90 = vld [vmem:[%s76 + $0x34] sm:$0xf]
    %v91 = vld [vmem:[%s76 + $0x38] sm:$0xf]
    %v92 = vld [vmem:[%s76 + $0x3c] sm:$0xf]
    %v93 = vld [vmem:[%s76 + $0x40] sm:$0xf]
    %v94 = vld [vmem:[%s76 + $0x44] sm:$0xf]
    %v95 = vld [vmem:[%s76 + $0x48] sm:$0xf]
    %v96 = vld [vmem:[%s76 + $0x4c] sm:$0xf]
    %v97 = vld [vmem:[%s76 + $0x50] sm:$0xf]
    %v98 = vld [vmem:[%s76 + $0x54] sm:$0xf]
    %v99 = vld [vmem:[%s76 + $0x58] sm:$0xf]
    %v100 = vld [vmem:[%s76 + $0x5c] sm:$0xf]
    %v101 = vld [vmem:[%s76 + $0x60] sm:$0xf]
    %v102 = vld [vmem:[%s76 + $0x64] sm:$0xf]
    %v103 = vld [vmem:[%s76 + $0x68] sm:$0xf]
    %v104 = vld [vmem:[%s76 + $0x6c] sm:$0xf]
    %v105 = vld [vmem:[%s76 + $0x70] sm:$0xf]
    %v106 = vld [vmem:[%s76 + $0x74] sm:$0xf]
    %v107 = vld [vmem:[%s76 + $0x78] sm:$0xf]
    %v108 = vld [vmem:[%s76 + $0x7c] sm:$0xf]
    %v109 = vld [vmem:[%s3] sm:$0xff]
    %v110 = vlaneseq
    %v111 = vshrl.u32 %v110, 7
    %v112 = vadd.s32 %v111, 8
    %v113 = vadd.s32 %v111, 16
    %v114 = vadd.s32 %v111, 24
    %v115 = vadd.s32 %v111, 32
    %v116 = vadd.s32 %v111, 40
    %vm117 = vcmp.lt.s32.totalorder %v111, 34
    %vm118 = vcmp.lt.s32.totalorder %v112, 34
    %vm119 = vcmp.lt.s32.totalorder %v113, 34
    %vm120 = vcmp.lt.s32.totalorder %v114, 34
    %vm121 = vcmp.lt.s32.totalorder %v115, 34
    %vm122 = vcmp.lt.s32.totalorder %v116, 34
    %v129 = vunpack.c.l.b16 %v32
    %v130 = vunpack.c.l.b16 %v33
    %v131 = vunpack.c.l.b16 %v34
    %v132 = vunpack.c.l.b16 %v35
    %v133 = vunpack.c.l.b16 %v36
    %v134 = vunpack.c.l.b16 %v37
    %v135 = vpack.c.b16 %v130, %v129
    %v136 = vpack.c.b16 %v132, %v131
    %v137 = vpack.c.b16 %v134, %v133
    %v144 = vunpack.c.l.b16 %v38
    %v145 = vunpack.c.l.b16 %v39
    %v146 = vunpack.c.l.b16 %v40
    %v147 = vunpack.c.l.b16 %v41
    %v148 = vunpack.c.l.b16 %v42
    %v149 = vunpack.c.l.b16 %v43
    %v150 = vpack.c.b16 %v145, %v144
    %v151 = vpack.c.b16 %v147, %v146
    %v152 = vpack.c.b16 %v149, %v148
    %vm156 = vcmask 392192
    %v158 = vsel %vm156, %v135, 0
    %v161 = vsel %vm156, %v136, 0
    %v164 = vsel %vm156, %v137, 0
    %166 = vmatprep.subr.bf16.mxu0 0
    %167 = vmatpush1.bf16.msra.mxu0 0
    %168 = vmatprep.subr.bf16.mxu0 0
    %169 = vmatpush1.bf16.msra.mxu0 0
    %170 = vmatprep.subr.bf16.mxu0 0
    %171 = vmatpush1.bf16.msra.mxu0 0
    %172 = vmatprep.subr.bf16.mxu0 0
    %173 = vmatpush1.bf16.msra.mxu0 0
    %174 = vmatprep.subr.bf16.mxu0 0
    %175 = vmatpush1.bf16.msra.mxu0 0
    %176 = vmatprep.subr.bf16.mxu0 0
    %177 = vmatpush1.bf16.msra.mxu0 %v152
    %178 = vmatprep.subr.bf16.mxu0 0
    %179 = vmatpush1.bf16.msra.mxu0 %v151
    %180 = vmatprep.subr.bf16.mxu0 0
    %181 = vmatpush1.bf16.msra.mxu0 %v150
    %182 = vmatprep.subr.bf16.mxu0 0
    %183 = vmatpush2.bf16.msra.mxu0 0
    %184 = vmatprep.subr.bf16.mxu0 0
    %185 = vmatpush2.bf16.msra.mxu0 0
    %186 = vmatprep.subr.bf16.mxu0 0
    %187 = vmatpush2.bf16.msra.mxu0 0
    %188 = vmatprep.subr.bf16.mxu0 0
    %189 = vmatpush2.bf16.msra.mxu0 0
    %190 = vmatprep.subr.bf16.mxu0 0
    %191 = vmatpush2.bf16.msra.mxu0 0
    %192 = vmatprep.subr.bf16.mxu0 0
    %193 = vmatpush2.bf16.msra.mxu0 0
    %194 = vmatprep.subr.bf16.mxu0 0
    %195 = vmatpush2.bf16.msra.mxu0 0
    %196 = vmatprep.subr.bf16.mxu0 0
    %197 = vmatpush2.bf16.msra.mxu0 0
    %198 = vmatprep.mubr.bf16.mxu0 0
    %199 = vmatmul.mubr.bf16.gmra.mxu0 %v158
    %v200 = vpop.f32.mrf.mxu0
    %v201 = vadd.f32 0.0, %v200
    %v202 = vpop.f32.mrf.mxu0
    %v203 = vpop.f32.mrf.mxu0
    %v204 = vadd.f32 0.0, %v203
    %v205 = vpop.f32.mrf.mxu0
    %206 = vmatprep.mubr.bf16.mxu0 0
    %207 = vmatmul.mubr.bf16.gmra.mxu0 %v161
    %v208 = vpop.f32.mrf.mxu0
    %v209 = vadd.f32 0.0, %v208
    %v210 = vpop.f32.mrf.mxu0
    %v211 = vpop.f32.mrf.mxu0
    %v212 = vadd.f32 0.0, %v211
    %v213 = vpop.f32.mrf.mxu0
    %214 = vmatprep.mubr.bf16.mxu0 0
    %215 = vmatmul.mubr.bf16.gmra.mxu0 %v164
    %v216 = vpop.f32.mrf.mxu0
    %v217 = vadd.f32 0.0, %v216
    %v218 = vpop.f32.mrf.mxu0
    %v219 = vpop.f32.mrf.mxu0
    %v220 = vadd.f32 0.0, %v219
    %v221 = vpop.f32.mrf.mxu0
    %222 = vdwg.mxu0
    %v223 = vpack.c.bf16 %v204, %v201
    %v224 = vpack.c.bf16 %v212, %v209
    %v225 = vpack.c.bf16 %v220, %v217
    %v226 = vlaneseq
    %v227 = vshrl.u32 %v226, 7
    %v228 = vsub.s32 0, %v227
    %v229 = vrot.slane %v109, %v228
    %v262 = vunpack.c.l.b16 %v44
    %v263 = vunpack.c.l.b16 %v45
    %v264 = vunpack.c.l.b16 %v46
    %v265 = vunpack.c.l.b16 %v47
    %v266 = vunpack.c.l.b16 %v48
    %v267 = vunpack.c.l.b16 %v49
    %v268 = vunpack.c.l.b16 %v50
    %v269 = vunpack.c.l.b16 %v51
    %v270 = vunpack.c.l.b16 %v52
    %v271 = vunpack.c.l.b16 %v53
    %v272 = vunpack.c.l.b16 %v54
    %v273 = vunpack.c.l.b16 %v55
    %v274 = vunpack.c.l.b16 %v56
    %v275 = vunpack.c.l.b16 %v57
    %v276 = vunpack.c.l.b16 %v58
    %v277 = vunpack.c.l.b16 %v59
    %v278 = vunpack.c.l.b16 %v60
    %v279 = vunpack.c.l.b16 %v61
    %v280 = vunpack.c.l.b16 %v62
    %v281 = vunpack.c.l.b16 %v63
    %v282 = vunpack.c.l.b16 %v64
    %v283 = vunpack.c.l.b16 %v65
    %v284 = vunpack.c.l.b16 %v66
    %v285 = vunpack.c.l.b16 %v67
    %v286 = vunpack.c.l.b16 %v68
    %v287 = vunpack.c.l.b16 %v69
    %v288 = vunpack.c.l.b16 %v70
    %v289 = vunpack.c.l.b16 %v71
    %v290 = vunpack.c.l.b16 %v72
    %v291 = vunpack.c.l.b16 %v73
    %v292 = vunpack.c.l.b16 %v74
    %v293 = vunpack.c.l.b16 %v75
    %v294 = vpack.c.b16 %v263, %v262
    %v295 = vpack.c.b16 %v265, %v264
    %v296 = vpack.c.b16 %v267, %v266
    %v297 = vpack.c.b16 %v269, %v268
    %v298 = vpack.c.b16 %v271, %v270
    %v299 = vpack.c.b16 %v273, %v272
    %v300 = vpack.c.b16 %v275, %v274
    %v301 = vpack.c.b16 %v277, %v276
    %v302 = vpack.c.b16 %v279, %v278
    %v303 = vpack.c.b16 %v281, %v280
    %v304 = vpack.c.b16 %v283, %v282
    %v305 = vpack.c.b16 %v285, %v284
    %v306 = vpack.c.b16 %v287, %v286
    %v307 = vpack.c.b16 %v289, %v288
    %v308 = vpack.c.b16 %v291, %v290
    %v309 = vpack.c.b16 %v293, %v292
    %326 = vmatprep.subr.bf16.mxu0 0
    %327 = vmatpush1.bf16.msra.mxu0 %v301
    %328 = vmatprep.subr.bf16.mxu0 0
    %329 = vmatpush1.bf16.msra.mxu0 %v300
    %330 = vmatprep.subr.bf16.mxu0 0
    %331 = vmatpush1.bf16.msra.mxu0 %v299
    %332 = vmatprep.subr.bf16.mxu0 0
    %333 = vmatpush1.bf16.msra.mxu0 %v298
    %334 = vmatprep.subr.bf16.mxu0 0
    %335 = vmatpush1.bf16.msra.mxu0 %v297
    %336 = vmatprep.subr.bf16.mxu0 0
    %337 = vmatpush1.bf16.msra.mxu0 %v296
    %338 = vmatprep.subr.bf16.mxu0 0
    %339 = vmatpush1.bf16.msra.mxu0 %v295
    %340 = vmatprep.subr.bf16.mxu0 0
    %341 = vmatpush1.bf16.msra.mxu0 %v294
    %342 = vmatprep.subr.bf16.mxu0 0
    %343 = vmatpush2.bf16.msra.mxu0 %v309
    %344 = vmatprep.subr.bf16.mxu0 0
    %345 = vmatpush2.bf16.msra.mxu0 %v308
    %346 = vmatprep.subr.bf16.mxu0 0
    %347 = vmatpush2.bf16.msra.mxu0 %v307
    %348 = vmatprep.subr.bf16.mxu0 0
    %349 = vmatpush2.bf16.msra.mxu0 %v306
    %350 = vmatprep.subr.bf16.mxu0 0
    %351 = vmatpush2.bf16.msra.mxu0 %v305
    %352 = vmatprep.subr.bf16.mxu0 0
    %353 = vmatpush2.bf16.msra.mxu0 %v304
    %354 = vmatprep.subr.bf16.mxu0 0
    %355 = vmatpush2.bf16.msra.mxu0 %v303
    %356 = vmatprep.subr.bf16.mxu0 0
    %357 = vmatpush2.bf16.msra.mxu0 %v302
    %358 = vmatprep.mubr.bf16.mxu0 %v223
    %359 = vmatmul.mubr.bf16.gmra.mxu0 %v150
    %v360 = vpop.f32.mrf.mxu0
    %v361 = vadd.f32 %v229, %v360
    %v362 = vpop.f32.mrf.mxu0
    %v363 = vpop.f32.mrf.mxu0
    %v364 = vadd.f32 %v229, %v363
    %v365 = vpop.f32.mrf.mxu0
    %366 = vmatprep.mubr.bf16.mxu0 %v224
    %367 = vmatmul.mubr.bf16.gmra.mxu0 %v151
    %v368 = vpop.f32.mrf.mxu0
    %v369 = vadd.f32 %v229, %v368
    %v370 = vpop.f32.mrf.mxu0
    %v371 = vpop.f32.mrf.mxu0
    %v372 = vadd.f32 %v229, %v371
    %v373 = vpop.f32.mrf.mxu0
    %374 = vmatprep.mubr.bf16.mxu0 %v225
    %375 = vmatmul.mubr.bf16.gmra.mxu0 %v152
    %v376 = vpop.f32.mrf.mxu0
    %v377 = vadd.f32 %v229, %v376
    %v378 = vpop.f32.mrf.mxu0
    %v379 = vpop.f32.mrf.mxu0
    %v380 = vadd.f32 %v229, %v379
    %v381 = vpop.f32.mrf.mxu0
    %382 = vdwg.mxu0
    %v383 = vmax.f32 %v361, 0.0
    %v384 = vmax.f32 %v364, 0.0
    %v385 = vmax.f32 %v369, 0.0
    %v386 = vmax.f32 %v372, 0.0
    %v387 = vmax.f32 %v377, 0.0
    %v388 = vmax.f32 %v380, 0.0
    %v389 = vsel %vm117, 1, 0
    %v390 = vsel %vm118, 1, 0
    %v391 = vsel %vm119, 1, 0
    %v392 = vsel %vm120, 1, 0
    %v393 = vsel %vm121, 1, 0
    %v394 = vsel %vm122, 1, 0
    %vm395 = vcmp.eq.s32.totalorder %v389, 1
    %vm396 = vcmp.eq.s32.totalorder %v390, 1
    %vm397 = vcmp.eq.s32.totalorder %v391, 1
    %vm398 = vcmp.eq.s32.totalorder %v392, 1
    %vm399 = vcmp.eq.s32.totalorder %v393, 1
    %vm400 = vcmp.eq.s32.totalorder %v394, 1
    %v401 = vsel %vm395, %v383, 0.0
    %v402 = vsel %vm396, %v384, 0.0
    %v403 = vsel %vm397, %v385, 0.0
    %v404 = vsel %vm398, %v386, 0.0
    %v405 = vsel %vm399, %v387, 0.0
    %v406 = vsel %vm400, %v388, 0.0
    %v407 = vpack.c.bf16 %v402, %v401
    %v408 = vpack.c.bf16 %v404, %v403
    %v409 = vpack.c.bf16 %v406, %v405
    %410 = vmatprep.subr.bf16.mxu0 0
    %411 = vmatpush1.bf16.msra.mxu0 0
    %412 = vmatprep.subr.bf16.mxu0 0
    %413 = vmatpush1.bf16.msra.mxu0 0
    %414 = vmatprep.subr.bf16.mxu0 0
    %415 = vmatpush1.bf16.msra.mxu0 0
    %416 = vmatprep.subr.bf16.mxu0 0
    %417 = vmatpush1.bf16.msra.mxu0 0
    %418 = vmatprep.subr.bf16.mxu0 0
    %419 = vmatpush1.bf16.msra.mxu0 0
    %420 = vmatprep.subr.bf16.mxu0 0
    %421 = vmatpush1.bf16.msra.mxu0 %v409
    %422 = vmatprep.subr.bf16.mxu0 0
    %423 = vmatpush1.bf16.msra.mxu0 %v408
    %424 = vmatprep.subr.bf16.mxu0 0
    %425 = vmatpush1.bf16.msra.mxu0 %v407
    %426 = vmatprep.subr.bf16.mxu0 0
    %427 = vmatpush2.bf16.msra.mxu0 0
    %428 = vmatprep.subr.bf16.mxu0 0
    %429 = vmatpush2.bf16.msra.mxu0 0
    %430 = vmatprep.subr.bf16.mxu0 0
    %431 = vmatpush2.bf16.msra.mxu0 0
    %432 = vmatprep.subr.bf16.mxu0 0
    %433 = vmatpush2.bf16.msra.mxu0 0
    %434 = vmatprep.subr.bf16.mxu0 0
    %435 = vmatpush2.bf16.msra.mxu0 0
    %436 = vmatprep.subr.bf16.mxu0 0
    %437 = vmatpush2.bf16.msra.mxu0 0
    %438 = vmatprep.subr.bf16.mxu0 0
    %439 = vmatpush2.bf16.msra.mxu0 0
    %440 = vmatprep.subr.bf16.mxu0 0
    %441 = vmatpush2.bf16.msra.mxu0 0
    %442 = vmatprep.mubr.bf16.mxu0 0
    %443 = vmatmul.mubr.bf16.gmra.mxu0 %v158
    %v444 = vpop.f32.mrf.mxu0
    %v445 = vadd.f32 0.0, %v444
    %v446 = vpop.f32.mrf.mxu0
    %v447 = vpop.f32.mrf.mxu0
    %v448 = vadd.f32 0.0, %v447
    %v449 = vpop.f32.mrf.mxu0
    %450 = vmatprep.mubr.bf16.mxu0 0
    %451 = vmatmul.mubr.bf16.gmra.mxu0 %v161
    %v452 = vpop.f32.mrf.mxu0
    %v453 = vadd.f32 0.0, %v452
    %v454 = vpop.f32.mrf.mxu0
    %v455 = vpop.f32.mrf.mxu0
    %v456 = vadd.f32 0.0, %v455
    %v457 = vpop.f32.mrf.mxu0
    %458 = vmatprep.mubr.bf16.mxu0 0
    %459 = vmatmul.mubr.bf16.gmra.mxu0 %v164
    %v460 = vpop.f32.mrf.mxu0
    %v461 = vadd.f32 0.0, %v460
    %v462 = vpop.f32.mrf.mxu0
    %v463 = vpop.f32.mrf.mxu0
    %v464 = vadd.f32 0.0, %v463
    %v465 = vpop.f32.mrf.mxu0
    %466 = vdwg.mxu0
    %v467 = vpack.c.bf16 %v448, %v445
    %v468 = vpack.c.bf16 %v456, %v453
    %v469 = vpack.c.bf16 %v464, %v461
    %v470 = vlaneseq
    %v471 = vshrl.u32 %v470, 7
    %v472 = vsub.s32 1, %v471
    %v473 = vrot.slane %v109, %v472
    %v506 = vunpack.c.l.b16 %v77
    %v507 = vunpack.c.l.b16 %v78
    %v508 = vunpack.c.l.b16 %v79
    %v509 = vunpack.c.l.b16 %v80
    %v510 = vunpack.c.l.b16 %v81
    %v511 = vunpack.c.l.b16 %v82
    %v512 = vunpack.c.l.b16 %v83
    %v513 = vunpack.c.l.b16 %v84
    %v514 = vunpack.c.l.b16 %v85
    %v515 = vunpack.c.l.b16 %v86
    %v516 = vunpack.c.l.b16 %v87
    %v517 = vunpack.c.l.b16 %v88
    %v518 = vunpack.c.l.b16 %v89
    %v519 = vunpack.c.l.b16 %v90
    %v520 = vunpack.c.l.b16 %v91
    %v521 = vunpack.c.l.b16 %v92
    %v522 = vunpack.c.l.b16 %v93
    %v523 = vunpack.c.l.b16 %v94
    %v524 = vunpack.c.l.b16 %v95
    %v525 = vunpack.c.l.b16 %v96
    %v526 = vunpack.c.l.b16 %v97
    %v527 = vunpack.c.l.b16 %v98
    %v528 = vunpack.c.l.b16 %v99
    %v529 = vunpack.c.l.b16 %v100
    %v530 = vunpack.c.l.b16 %v101
    %v531 = vunpack.c.l.b16 %v102
    %v532 = vunpack.c.l.b16 %v103
    %v533 = vunpack.c.l.b16 %v104
    %v534 = vunpack.c.l.b16 %v105
    %v535 = vunpack.c.l.b16 %v106
    %v536 = vunpack.c.l.b16 %v107
    %v537 = vunpack.c.l.b16 %v108
    %v538 = vpack.c.b16 %v507, %v506
    %v539 = vpack.c.b16 %v509, %v508
    %v540 = vpack.c.b16 %v511, %v510
    %v541 = vpack.c.b16 %v513, %v512
    %v542 = vpack.c.b16 %v515, %v514
    %v543 = vpack.c.b16 %v517, %v516
    %v544 = vpack.c.b16 %v519, %v518
    %v545 = vpack.c.b16 %v521, %v520
    %v546 = vpack.c.b16 %v523, %v522
    %v547 = vpack.c.b16 %v525, %v524
    %v548 = vpack.c.b16 %v527, %v526
    %v549 = vpack.c.b16 %v529, %v528
    %v550 = vpack.c.b16 %v531, %v530
    %v551 = vpack.c.b16 %v533, %v532
    %v552 = vpack.c.b16 %v535, %v534
    %v553 = vpack.c.b16 %v537, %v536
    %570 = vmatprep.subr.bf16.mxu0 0
    %571 = vmatpush1.bf16.msra.mxu0 %v545
    %572 = vmatprep.subr.bf16.mxu0 0
    %573 = vmatpush1.bf16.msra.mxu0 %v544
    %574 = vmatprep.subr.bf16.mxu0 0
    %575 = vmatpush1.bf16.msra.mxu0 %v543
    %576 = vmatprep.subr.bf16.mxu0 0
    %577 = vmatpush1.bf16.msra.mxu0 %v542
    %578 = vmatprep.subr.bf16.mxu0 0
    %579 = vmatpush1.bf16.msra.mxu0 %v541
    %580 = vmatprep.subr.bf16.mxu0 0
    %581 = vmatpush1.bf16.msra.mxu0 %v540
    %582 = vmatprep.subr.bf16.mxu0 0
    %583 = vmatpush1.bf16.msra.mxu0 %v539
    %584 = vmatprep.subr.bf16.mxu0 0
    %585 = vmatpush1.bf16.msra.mxu0 %v538
    %586 = vmatprep.subr.bf16.mxu0 0
    %587 = vmatpush2.bf16.msra.mxu0 %v553
    %588 = vmatprep.subr.bf16.mxu0 0
    %589 = vmatpush2.bf16.msra.mxu0 %v552
    %590 = vmatprep.subr.bf16.mxu0 0
    %591 = vmatpush2.bf16.msra.mxu0 %v551
    %592 = vmatprep.subr.bf16.mxu0 0
    %593 = vmatpush2.bf16.msra.mxu0 %v550
    %594 = vmatprep.subr.bf16.mxu0 0
    %595 = vmatpush2.bf16.msra.mxu0 %v549
    %596 = vmatprep.subr.bf16.mxu0 0
    %597 = vmatpush2.bf16.msra.mxu0 %v548
    %598 = vmatprep.subr.bf16.mxu0 0
    %599 = vmatpush2.bf16.msra.mxu0 %v547
    %600 = vmatprep.subr.bf16.mxu0 0
    %601 = vmatpush2.bf16.msra.mxu0 %v546
    %602 = vmatprep.mubr.bf16.mxu0 %v467
    %603 = vmatmul.mubr.bf16.gmra.mxu0 %v407
    %v604 = vpop.f32.mrf.mxu0
    %v605 = vadd.f32 %v473, %v604
    %v606 = vpop.f32.mrf.mxu0
    %v607 = vpop.f32.mrf.mxu0
    %v608 = vadd.f32 %v473, %v607
    %v609 = vpop.f32.mrf.mxu0
    %610 = vmatprep.mubr.bf16.mxu0 %v468
    %611 = vmatmul.mubr.bf16.gmra.mxu0 %v408
    %v612 = vpop.f32.mrf.mxu0
    %v613 = vadd.f32 %v473, %v612
    %v614 = vpop.f32.mrf.mxu0
    %v615 = vpop.f32.mrf.mxu0
    %v616 = vadd.f32 %v473, %v615
    %v617 = vpop.f32.mrf.mxu0
    %618 = vmatprep.mubr.bf16.mxu0 %v469
    %619 = vmatmul.mubr.bf16.gmra.mxu0 %v409
    %v620 = vpop.f32.mrf.mxu0
    %v621 = vadd.f32 %v473, %v620
    %v622 = vpop.f32.mrf.mxu0
    %v623 = vpop.f32.mrf.mxu0
    %v624 = vadd.f32 %v473, %v623
    %v625 = vpop.f32.mrf.mxu0
    %626 = vdwg.mxu0
    %627 = vst [vmem:[%s4] sm:$0xff] %v605
    %628 = vst [vmem:[%s4 + $0x8] sm:$0xff] %v608
    %629 = vst [vmem:[%s4 + $0x10] sm:$0xff] %v613
    %630 = vst [vmem:[%s4 + $0x18] sm:$0xff] %v616
    %631 = vst [vmem:[%s4 + $0x20] sm:$0xff] %v621
    %632 = vst [vmem:[%s4 + $0x28] sm:$0xff] %v624
    // Predicated region
    $region22: #{graphsage_forward.1} parent=1 // pred_check
      _
    $region23: #{graphsage_forward.1} parent=1 // pred_check_branch
      %634 = sbr.rel (0) target = $region25
    $region24: #{graphsage_forward.1} parent=1 // pred_region
      _
    $region25: #{graphsage_forward.1} parent=1 // pred_fallthru
      _
    // Predicated region
    $region26: #{graphsage_forward.1} parent=1 // pred_check
      _
    $region27: #{graphsage_forward.1} parent=1 // pred_check_branch
      %636 = sbr.rel (0) target = $region29
    $region28: #{graphsage_forward.1} parent=1 // pred_region
      _
    $region29: #{graphsage_forward.1} parent=1 // pred_fallthru
      _
    %637 = vsyncpa [#allocation3], 1

</llo_original>
